<compile_context>
chip_gen: v7x
topology: tpu7x:2x2x1
jax: 0.10.0
libtpu: 0.0.40
codegen_flags: <defaults>
</compile_context>

<pallas_src>
import math
from functools import partial

import jax
import jax.numpy as jnp
from jax import lax
from jax.experimental import pallas as pl
from jax.experimental.pallas import tpu as pltpu


HEAD_PAD = 128            # lane-dense padded width for the fused agg|cond_op head
CC_PAD = 128              # lane-dense padded width for the cond_conn_op head
VMEM_LIMIT = 48 * 1024 * 1024


def _fit(dim, target, quantum=8):
    """Largest tile <= target dividing dim, preferring multiples of `quantum`.

    Never silently returns the full dimension when dim > target unless no
    divisor exists (keeps block sizes / VMEM bounded on non-divisible shapes).
    """
    if dim <= target:
        return dim
    t = (target // quantum) * quantum
    while t >= quantum:
        if dim % t == 0:
            return t
        t -= quantum
    t = target
    while t > 1:
        if dim % t == 0:
            return t
        t -= 1
    return dim  # pathological prime dim: full dim (always layout-legal)


# ----------------------------- Pallas kernels ------------------------------

def _matmul_kernel(x_ref, w_ref, b_ref, o_ref, acc_ref, *, activation):
    """Tiled GEMM with f32 accumulator and fused bias/activation epilogue."""
    k = pl.program_id(2)

    @pl.when(k == 0)
    def _():
        acc_ref[...] = jnp.zeros_like(acc_ref)

    acc_ref[...] += jnp.dot(x_ref[...], w_ref[...],
                            preferred_element_type=jnp.float32)

    @pl.when(k == pl.num_programs(2) - 1)
    def _():
        y = acc_ref[...] + b_ref[...]
        if activation == "gelu":
            # TODO(synk): HF BERT uses exact erf GELU (approximate=False); the
            # tanh approximation is used here for guaranteed Mosaic lowering.
            y = jax.nn.gelu(y, approximate=True)
        elif activation == "tanh":
            y = jnp.tanh(y)
        o_ref[...] = y.astype(o_ref.dtype)


def linear(x, w, b, activation="none", out_dtype=jnp.bfloat16,
           tm=512, tn=512, tk=512):
    """x: (M,K) bf16, w: (K,N) bf16, b: (N,) f32 -> (M,N) out_dtype."""
    M, K = x.shape
    K2, N = w.shape
    assert K == K2
    tm = _fit(M, tm, 8)
    tn = _fit(N, tn, 128)
    tk = _fit(K, tk, 128)
    grid = (M // tm, N // tn, K // tk)
    return pl.pallas_call(
        partial(_matmul_kernel, activation=activation),
        out_shape=jax.ShapeDtypeStruct((M, N), out_dtype),
        grid_spec=pltpu.PrefetchScalarGridSpec(
            num_scalar_prefetch=0, grid=grid,
            in_specs=[pl.BlockSpec((tm, tk), lambda i, j, k: (i, k)),
                      pl.BlockSpec((tk, tn), lambda i, j, k: (k, j)),
                      pl.BlockSpec((1, tn), lambda i, j, k: (0, j))],
            out_specs=pl.BlockSpec((tm, tn), lambda i, j, k: (i, j)),
            scratch_shapes=[pltpu.VMEM((tm, tn), jnp.float32)]),
        compiler_params=pltpu.CompilerParams(
            dimension_semantics=("parallel", "parallel", "arbitrary"),
            vmem_limit_bytes=VMEM_LIMIT),
    )(x, w, b.reshape(1, N).astype(jnp.float32))


def _matmul_res_ln_kernel(x_ref, w_ref, b_ref, r_ref, g_ref, beta_ref,
                          o_ref, acc_ref, *, eps):
    """Tiled GEMM + bias + residual-add + LayerNorm fused epilogue."""
    k = pl.program_id(1)

    @pl.when(k == 0)
    def _():
        acc_ref[...] = jnp.zeros_like(acc_ref)

    acc_ref[...] += jnp.dot(x_ref[...], w_ref[...],
                            preferred_element_type=jnp.float32)

    @pl.when(k == pl.num_programs(1) - 1)
    def _():
        y = acc_ref[...] + b_ref[...] + r_ref[...].astype(jnp.float32)
        mu = jnp.mean(y, axis=-1, keepdims=True)
        var = jnp.mean(jnp.square(y - mu), axis=-1, keepdims=True)
        o_ref[...] = ((y - mu) * lax.rsqrt(var + eps) * g_ref[...]
                      + beta_ref[...]).astype(o_ref.dtype)


def linear_res_ln(x, w, b, residual, g, beta, out_dtype=jnp.bfloat16,
                  tm=512, tk=512, eps=1e-12):
    """LayerNorm(residual + x @ w + b). Full feature dim per tile (LN needs it)."""
    M, K = x.shape
    K2, N = w.shape
    assert K == K2 and residual.shape == (M, N)
    tm = _fit(M, tm, 8)
    tk = _fit(K, tk, 128)
    grid = (M // tm, K // tk)
    return pl.pallas_call(
        partial(_matmul_res_ln_kernel, eps=eps),
        out_shape=jax.ShapeDtypeStruct((M, N), out_dtype),
        grid_spec=pltpu.PrefetchScalarGridSpec(
            num_scalar_prefetch=0, grid=grid,
            in_specs=[pl.BlockSpec((tm, tk), lambda i, k: (i, k)),
                      pl.BlockSpec((tk, N), lambda i, k: (k, 0)),
                      pl.BlockSpec((1, N), lambda i, k: (0, 0)),
                      pl.BlockSpec((tm, N), lambda i, k: (i, 0)),
                      pl.BlockSpec((1, N), lambda i, k: (0, 0)),
                      pl.BlockSpec((1, N), lambda i, k: (0, 0))],
            out_specs=pl.BlockSpec((tm, N), lambda i, k: (i, 0)),
            scratch_shapes=[pltpu.VMEM((tm, N), jnp.float32)]),
        compiler_params=pltpu.CompilerParams(
            dimension_semantics=("parallel", "arbitrary"),
            vmem_limit_bytes=VMEM_LIMIT),
    )(x, w, b.reshape(1, N).astype(jnp.float32), residual,
      g.reshape(1, N), beta.reshape(1, N))


def _ln_kernel(x_ref, g_ref, b_ref, o_ref):
    x = x_ref[...].astype(jnp.float32)
    mu = jnp.mean(x, axis=-1, keepdims=True)
    var = jnp.mean(jnp.square(x - mu), axis=-1, keepdims=True)
    o_ref[...] = ((x - mu) * lax.rsqrt(var + 1e-12) * g_ref[...]
                  + b_ref[...]).astype(o_ref.dtype)


def layernorm(x, g, b, out_dtype=jnp.bfloat16, tm=512):
    """Row-tiled standalone LayerNorm (used for the embedding LN)."""
    M, H = x.shape
    tm = _fit(M, tm, 8)
    return pl.pallas_call(
        _ln_kernel,
        out_shape=jax.ShapeDtypeStruct((M, H), out_dtype),
        grid=(M // tm,),
        in_specs=[pl.BlockSpec((tm, H), lambda i: (i, 0)),
                  pl.BlockSpec((1, H), lambda i: (0, 0)),
                  pl.BlockSpec((1, H), lambda i: (0, 0))],
        out_specs=pl.BlockSpec((tm, H), lambda i: (i, 0)),
        compiler_params=pltpu.CompilerParams(dimension_semantics=("parallel",)),
    )(x, g.reshape(1, H), b.reshape(1, H))


def _attention_kernel(q_ref, k_ref, v_ref, mb_ref, o_ref, *, hp, dh):
    """One (batch, head-group) tile of multi-head attention.

    q/k/v refs are (1, S, hp*dh) windows of the fused QKV slab; the 1/sqrt(dh)
    scale is already folded into the Q projection weights.
    """
    S = q_ref.shape[1]
    q = q_ref[0]                      # (S, hp*dh) bf16
    k = k_ref[0]
    v = v_ref[0]
    bias = mb_ref[0]                  # (1, S) f32 additive mask

    if hp == 1:
        # single head per step: (S,S) score tile, no reshapes at all
        s = lax.dot_general(q, k, (((1,), (1,)), ((), ())),
                            preferred_element_type=jnp.float32)       # (S, S)
        s = s + bias
        s = s - jnp.max(s, axis=-1, keepdims=True)
        p = jnp.exp(s)
        p = p * pl.reciprocal(jnp.sum(p, axis=-1, keepdims=True), approx=True)
        ctx = jnp.dot(p.astype(v.dtype), v, preferred_element_type=jnp.float32)
        o_ref[0] = ctx.astype(o_ref.dtype)
    else:
        qh = q.reshape(S, hp, dh)
        kh = k.reshape(S, hp, dh)
        vh = v.reshape(S, hp, dh)
        s = jnp.einsum("qhd,khd->hqk", qh, kh,
                       preferred_element_type=jnp.float32)            # (hp,S,S)
        s = s + bias[None, :, :]
        s = s - jnp.max(s, axis=-1, keepdims=True)
        p = jnp.exp(s)
        p = p * pl.reciprocal(jnp.sum(p, axis=-1, keepdims=True), approx=True)
        ctx = jnp.einsum("hqk,khd->qhd", p.astype(vh.dtype), vh,
                         preferred_element_type=jnp.float32)           # (S,hp,dh)
        o_ref[0] = ctx.reshape(S, hp * dh).astype(o_ref.dtype)


def attention(qkv, mask_bias, *, n_heads):
    """qkv: (B, S, 3H) bf16 fused slab; mask_bias: (B,1,S) f32 -> (B, S, H)."""
    # TODO(synk): for long sequences (S >> 512) switch to a flash-style
    # KV-tiled online-softmax variant instead of materializing (S, S) scores.
    B, S, H3 = qkv.shape
    H = H3 // 3
    dh = H // n_heads
    # heads per grid step: largest divisor of n_heads with hp*dh <= 128
    # (head pairs for dh=64 keep the lane dim at 128).
    hp = 1
    for c in range(n_heads, 0, -1):
        if n_heads % c == 0 and c * dh <= 128:
            hp = c
            break
    ng = n_heads // hp
    blk = hp * dh

    def qkv_spec(off):
        return pl.BlockSpec((1, S, blk), lambda b, g: (b, 0, off * ng + g))

    return pl.pallas_call(
        partial(_attention_kernel, hp=hp, dh=dh),
        out_shape=jax.ShapeDtypeStruct((B, S, H), qkv.dtype),
        grid=(B, ng),
        in_specs=[qkv_spec(0), qkv_spec(1), qkv_spec(2),
                  pl.BlockSpec((1, 1, S), lambda b, g: (b, 0, 0))],
        out_specs=pl.BlockSpec((1, S, blk), lambda b, g: (b, 0, g)),
        compiler_params=pltpu.CompilerParams(
            dimension_semantics=("parallel", "parallel")),
    )(qkv, qkv, qkv, mask_bias)


def _gather_head_kernel(idx_ref, x_ref, w_ref, b_ref, o_ref):
    # Header-row gather fused into the agg|cond_op head GEMM: the
    # data-dependent row selection happens in the index_map (scalar prefetch);
    # hiddens stay in HBM, only the needed rows reach VMEM.
    del idx_ref
    y = jnp.dot(x_ref[0], w_ref[...],
                preferred_element_type=jnp.float32) + b_ref[...]
    o_ref[0] = y.astype(o_ref.dtype)


def gather_head(x2d, flat_idx, w, b):
    """x2d: (M, H); flat_idx: (n,) int32 row ids; w: (H, N) -> (n, N) f32."""
    M, H = x2d.shape
    n = flat_idx.shape[0]
    N = w.shape[1]
    out = pl.pallas_call(
        _gather_head_kernel,
        out_shape=jax.ShapeDtypeStruct((n, 1, N), jnp.float32),
        grid_spec=pltpu.PrefetchScalarGridSpec(
            num_scalar_prefetch=1, grid=(n,),
            in_specs=[pl.BlockSpec((1, 1, H), lambda i, idx: (idx[i], 0, 0)),
                      pl.BlockSpec((H, N), lambda i, idx: (0, 0)),
                      pl.BlockSpec((1, N), lambda i, idx: (0, 0))],
            out_specs=pl.BlockSpec((1, 1, N), lambda i, idx: (i, 0, 0))),
        compiler_params=pltpu.CompilerParams(
            dimension_semantics=("arbitrary",)),
    )(flat_idx, x2d.reshape(M, 1, H), w, b.reshape(1, N).astype(jnp.float32))
    return out.reshape(n, N)


def _pooler_cc_kernel(x_ref, pw_ref, pb_ref, cw_ref, cb_ref, o_ref):
    # BERT pooler (tanh) fused with the (lane-padded) cond_conn_op head.
    cls = jnp.tanh(jnp.dot(x_ref[...], pw_ref[...],
                           preferred_element_type=jnp.float32) + pb_ref[...])
    cc = jnp.dot(cls.astype(cw_ref.dtype), cw_ref[...],
                 preferred_element_type=jnp.float32) + cb_ref[...]
    o_ref[...] = cc.astype(o_ref.dtype)


def pooler_cc_head(x0, pool_w, pool_b, w_cc_pad, b_cc_pad):
    B, H = x0.shape
    N = w_cc_pad.shape[1]
    return pl.pallas_call(
        _pooler_cc_kernel,
        out_shape=jax.ShapeDtypeStruct((B, N), jnp.float32),
    )(x0, pool_w, pool_b.reshape(1, H).astype(jnp.float32),
      w_cc_pad, b_cc_pad.reshape(1, N).astype(jnp.float32))


# ------------------------------ model (glue) --------------------------------

def init_params(key, *, vocab, hidden, n_layers, intermediate, max_pos,
                type_vocab, n_heads):
    keys = iter(jax.random.split(key, 16 + 8 * n_layers))
    H = hidden
    dh = H // n_heads
    q_scale = 1.0 / math.sqrt(dh)

    def w(shape, dtype=jnp.bfloat16):
        return (jax.random.normal(next(keys), shape, jnp.float32) * 0.02).astype(dtype)

    p = dict(
        word_emb=w((vocab, H), jnp.float32),
        pos_emb=w((max_pos, H), jnp.float32),
        type_emb=w((type_vocab, H), jnp.float32),
        emb_ln_g=jnp.ones((H,), jnp.float32),
        emb_ln_b=jnp.zeros((H,), jnp.float32),
        pool_w=w((H, H)), pool_b=jnp.zeros((H,), jnp.float32),
        layers=[],
    )

    # cond_conn_op head: lane-padded to 128 columns, cols [0:3] are the real head.
    w_cc = w((H, 3), jnp.float32)
    w_cc_pad = jnp.zeros((H, CC_PAD), jnp.float32).at[:, :3].set(w_cc)
    p["w_cc"] = w_cc_pad.astype(jnp.bfloat16)
    p["b_cc"] = jnp.zeros((CC_PAD,), jnp.float32)

    # Fused, lane-padded agg|cond_op head: cols [0:7]=agg, [7:12]=cond_op.
    w_agg = w((H, 7), jnp.float32)
    w_op = w((H, 5), jnp.float32)
    w_head = jnp.zeros((H, HEAD_PAD), jnp.float32)
    w_head = w_head.at[:, :7].set(w_agg).at[:, 7:12].set(w_op)
    p["w_head"] = w_head.astype(jnp.bfloat16)
    p["b_head"] = jnp.zeros((HEAD_PAD,), jnp.float32)

    for _ in range(n_layers):
        # 1/sqrt(dh) attention-score scale is folded into the Q projection.
        wq = w((H, H), jnp.float32) * q_scale
        wk = w((H, H), jnp.float32)
        wv = w((H, H), jnp.float32)
        p["layers"].append(dict(
            w_qkv=jnp.concatenate([wq, wk, wv], axis=1).astype(jnp.bfloat16),
            b_qkv=jnp.zeros((3 * H,), jnp.float32),
            wo=w((H, H)), bo=jnp.zeros((H,), jnp.float32),
            ln1_g=jnp.ones((H,), jnp.float32), ln1_b=jnp.zeros((H,), jnp.float32),
            wi=w((H, intermediate)), bi=jnp.zeros((intermediate,), jnp.float32),
            wo2=w((intermediate, H)), bo2=jnp.zeros((H,), jnp.float32),
            ln2_g=jnp.ones((H,), jnp.float32), ln2_b=jnp.zeros((H,), jnp.float32),
        ))
    return p


def n2sm1_forward(params, input_ids, attention_mask, token_type_ids, header_ids,
                  *, n_heads):
    B, S = input_ids.shape
    H = params["emb_ln_g"].shape[0]
    M = B * S
    n_headers = header_ids.shape[1]

    # embeddings (table lookups are glue) + Pallas row-tiled LayerNorm -> bf16
    emb = (params["word_emb"][input_ids]
           + params["pos_emb"][None, :S, :]
           + params["type_emb"][token_type_ids])
    x = layernorm(emb.reshape(M, H), params["emb_ln_g"], params["emb_ln_b"])

    # additive attention mask computed once (0 = attend, -1e9 = masked)
    mask_bias = ((attention_mask.astype(jnp.float32) - 1.0) * 1e9).reshape(B, 1, S)

    for lp in params["layers"]:
        # fused QKV projection: one GEMM; Q/K/V windows are sliced by the
        # attention kernel's BlockSpecs (no HBM copies of q/k/v)
        qkv = linear(x, lp["w_qkv"], lp["b_qkv"]).reshape(B, S, 3 * H)
        ctx = attention(qkv, mask_bias, n_heads=n_heads).reshape(M, H)
        # attention output projection + residual + LN1 (fused epilogue)
        x = linear_res_ln(ctx, lp["wo"], lp["bo"], x, lp["ln1_g"], lp["ln1_b"])
        # FFN: GELU GEMM, then output GEMM + residual + LN2 (fused epilogue)
        inter = linear(x, lp["wi"], lp["bi"], activation="gelu")
        x = linear_res_ln(inter, lp["wo2"], lp["bo2"], x, lp["ln2_g"], lp["ln2_b"])

    # BERT pooler (tanh) + cond_conn_op head, fused in one small kernel
    x0 = x.reshape(B, S, H)[:, 0, :]
    cc_pad = pooler_cc_head(x0, params["pool_w"], params["pool_b"],
                            params["w_cc"], params["b_cc"])
    cond_conn_op = cc_pad[:, :3]

    # get_agg_hiddens + agg/cond_op heads, fused: header-row gather happens
    # inside the head GEMM via a data-dependent index_map (scalar prefetch)
    flat_idx = (jnp.arange(B, dtype=jnp.int32)[:, None] * S
                + header_ids.astype(jnp.int32)).reshape(-1)
    head_out = gather_head(x, flat_idx, params["w_head"], params["b_head"])
    agg = head_out[:, :7].reshape(B, n_headers, 7)
    cond_op = head_out[:, 7:12].reshape(B, n_headers, 5)

    # matches PyTorch return order: (cond_conn_op, cond_op, agg)
    return cond_conn_op, cond_op, agg


# --------------------------------- main --------------------------------------

if __name__ == "__main__":
    B, S, H = 2, 16, 128
    n_heads, n_layers, intermediate = 2, 2, 256
    vocab, type_vocab, n_headers = 64, 2, 4

    key = jax.random.PRNGKey(0)
    k_ids, k_hdr = jax.random.split(key, 2)
    input_ids = jax.random.randint(k_ids, (B, S), 0, vocab, dtype=jnp.int32)
    attention_mask = jnp.ones((B, S), jnp.int32)
    token_type_ids = jnp.zeros((B, S), jnp.int32)
    header_ids = jax.random.randint(k_hdr, (B, n_headers), 0, S, dtype=jnp.int32)

    # TODO(synk): pretrained BertModel weights are not loadable here; backbone
    # parameters are synthetic but deterministically initialized.
    params = init_params(jax.random.PRNGKey(1), vocab=vocab, hidden=H,
                         n_layers=n_layers, intermediate=intermediate,
                         max_pos=S, type_vocab=type_vocab, n_heads=n_heads)

    cond_conn_op, cond_op, agg = n2sm1_forward(
        params, input_ids, attention_mask, token_type_ids, header_ids,
        n_heads=n_heads)
    jax.block_until_ready((cond_conn_op, cond_op, agg))

    assert cond_conn_op.shape == (B, 3)
    assert cond_op.shape == (B, n_headers, 5)
    assert agg.shape == (B, n_headers, 7)
    print("KERNEL_OK")
</pallas_src>

<mosaic_0001>
module attributes {stable_mosaic.version = 11 : i64} {
  func.func @_ln_kernel(%arg0: i32, %arg1: memref<32x128xf32, #tpu.memory_space<vmem>>, %arg2: memref<1x128xf32, #tpu.memory_space<vmem>>, %arg3: memref<1x128xf32, #tpu.memory_space<vmem>>, %arg4: memref<32x128xbf16, #tpu.memory_space<vmem>>) attributes {dimension_semantics = [#tpu.dimension_semantics<parallel>], iteration_bounds = array<i64: 1>, scalar_prefetch = 0 : i64, scratch_operands = 0 : i64, tpu.core_type = #tpu.core_type<tc>, window_params = [{transform_indices = @transform_0, window_bounds = array<i64: 32, 128>}, {pipeline_mode = #tpu.pipeline_mode<synchronous>, transform_indices = @transform_1, window_bounds = array<i64: 1, 128>}, {pipeline_mode = #tpu.pipeline_mode<synchronous>, transform_indices = @transform_2, window_bounds = array<i64: 1, 128>}, {transform_indices = @transform_3, window_bounds = array<i64: 32, 128>}]} {
    %c0 = arith.constant 0 : index
    %c0_0 = arith.constant 0 : index
    %0 = vector.load %arg1[%c0, %c0_0] : memref<32x128xf32, #tpu.memory_space<vmem>>, vector<32x128xf32>
    %cst = arith.constant dense<0.000000e+00> : vector<32xf32>
    %1 = vector.multi_reduction <add>, %0, %cst [1] : vector<32x128xf32> to vector<32xf32>
    %2 = vector.shape_cast %1 : vector<32xf32> to vector<32x1xf32>
    %cst_1 = arith.constant 1.280000e+02 : f32
    %3 = vector.broadcast %cst_1 : f32 to vector<32x1xf32>
    %4 = arith.divf %2, %3 : vector<32x1xf32>
    %5 = vector.broadcast %4 : vector<32x1xf32> to vector<32x128xf32>
    %6 = arith.subf %0, %5 : vector<32x128xf32>
    %7 = arith.mulf %6, %6 : vector<32x128xf32>
    %cst_2 = arith.constant dense<0.000000e+00> : vector<32xf32>
    %8 = vector.multi_reduction <add>, %7, %cst_2 [1] : vector<32x128xf32> to vector<32xf32>
    %9 = vector.shape_cast %8 : vector<32xf32> to vector<32x1xf32>
    %cst_3 = arith.constant 1.280000e+02 : f32
    %10 = vector.broadcast %cst_3 : f32 to vector<32x1xf32>
    %11 = arith.divf %9, %10 : vector<32x1xf32>
    %12 = vector.broadcast %4 : vector<32x1xf32> to vector<32x128xf32>
    %13 = arith.subf %0, %12 : vector<32x128xf32>
    %cst_4 = arith.constant 9.99999996E-13 : f32
    %14 = vector.broadcast %cst_4 : f32 to vector<32x1xf32>
    %15 = arith.addf %11, %14 : vector<32x1xf32>
    %16 = math.rsqrt %15 : vector<32x1xf32>
    %17 = vector.broadcast %16 : vector<32x1xf32> to vector<32x128xf32>
    %18 = arith.mulf %13, %17 : vector<32x128xf32>
    %c0_5 = arith.constant 0 : index
    %c0_6 = arith.constant 0 : index
    %19 = vector.load %arg2[%c0_5, %c0_6] : memref<1x128xf32, #tpu.memory_space<vmem>>, vector<1x128xf32>
    %20 = vector.broadcast %19 : vector<1x128xf32> to vector<32x128xf32>
    %21 = arith.mulf %18, %20 : vector<32x128xf32>
    %c0_7 = arith.constant 0 : index
    %c0_8 = arith.constant 0 : index
    %22 = vector.load %arg3[%c0_7, %c0_8] : memref<1x128xf32, #tpu.memory_space<vmem>>, vector<1x128xf32>
    %23 = vector.broadcast %22 : vector<1x128xf32> to vector<32x128xf32>
    %24 = arith.addf %21, %23 : vector<32x128xf32>
    %25 = arith.truncf %24 : vector<32x128xf32> to vector<32x128xbf16>
    %c0_9 = arith.constant 0 : index
    %c0_10 = arith.constant 0 : index
    %26 = vector.load %arg4[%c0_9, %c0_10] : memref<32x128xbf16, #tpu.memory_space<vmem>>, vector<32x128xbf16>
    tpu.vector_store %arg4[%c0_9, %c0_10], %25 {strides = array<i32>} : memref<32x128xbf16, #tpu.memory_space<vmem>>, vector<32x128xbf16>,
    return
  }
  func.func @transform_0(%arg0: i32) -> (i32, i32) {
    %c0_i32 = arith.constant 0 : i32
    %c0_i32_0 = arith.constant 0 : i32
    return %arg0, %c0_i32 : i32, i32
  }
  func.func @transform_1(%arg0: i32) -> (i32, i32) {
    %c0_i32 = arith.constant 0 : i32
    %c0_i32_0 = arith.constant 0 : i32
    %c0_i32_1 = arith.constant 0 : i32
    return %c0_i32, %c0_i32_0 : i32, i32
  }
  func.func @transform_2(%arg0: i32) -> (i32, i32) {
    %c0_i32 = arith.constant 0 : i32
    %c0_i32_0 = arith.constant 0 : i32
    %c0_i32_1 = arith.constant 0 : i32
    return %c0_i32, %c0_i32_0 : i32, i32
  }
  func.func @transform_3(%arg0: i32) -> (i32, i32) {
    %c0_i32 = arith.constant 0 : i32
    %c0_i32_0 = arith.constant 0 : i32
    return %arg0, %c0_i32 : i32, i32
  }
}

</mosaic_0001>

<llo_original>
// kernel: tpu_custom_call.1
$region0: #{tpu_custom_call.1}
  #allocation0 [shape = 'u32[]', space=smem, size = 0x4, offset = 0x4, fixed_abs, tag = 'smem constant byte address 0x4 - core index']
  #allocation1 [shape = 'u32[144,128]{1,0:T(1,128)}', space=vmem, size = 0x12000, scoped, tag = 'internal scratch']
  %s0 = inlined_call_operand.hbm [shape: f32[32,128], index: 0, kind: input, shape index: {}]
  %s1 = inlined_call_operand.vmem [shape: f32[1,128], index: 1, kind: input, shape index: {}]
  %s2 = inlined_call_operand.vmem [shape: f32[1,128], index: 2, kind: input, shape index: {}]
  %s3 = inlined_call_operand.hbm [shape: bf16[32,128], index: 3, kind: output, shape index: {}]
  %s4 = sld [smem:[#allocation0]]
  $region26: #{tpu_custom_call.1} parent=0
    _
  %s6 = ssub.s32 1, %s4
  %s7 = scalar_select 0, %s6, %s4
  $region1: #{tpu_custom_call.1} parent=0
    #allocation2 [shape = 'u8[16384]{0}', space=vmem, size = 0x4000, scoped, tag = 'input window, operand 0, single buffered']
    #allocation3 [shape = 's32[1]{0}', space=sflag, size = 0x4, scoped, tag = 'scoped memory for tpu_custom_call.1']
    #allocation4 [shape = 's32[1]{0}', space=sflag, size = 0x4, scoped, tag = 'scoped memory for tpu_custom_call.1']
    #allocation5 [shape = 'u8[8192]{0}', space=vmem, size = 0x2000, scoped, tag = 'output window, operand 0, single buffered']
    %8 = vsyncpa [#allocation3], 0
    %9 = vsyncpa [#allocation4], 0
    // Predicated region
    $region2: #{tpu_custom_call.1} parent=1 // pred_check
      _
    $region3: #{tpu_custom_call.1} parent=1 // pred_check_branch
      %11 = sbr.rel (0) target = $region5
    $region4: #{tpu_custom_call.1} parent=1 // pred_region
      %s13 = ssub.s32 512, 512
      %14 = vsyncadd [#allocation3], %s13
      %s15 = sshll.u32 [#allocation2], 4
      %s16 = int_to_ptr.vmem [resolvable:$true] %s15
      %21 = dma.hbm_to_vmem [thread:$0]  %s0, 512, %s16, [#allocation3], 128, 128, 8
    $region5: #{tpu_custom_call.1} parent=1 // pred_fallthru
      _
    // Predicated region
    $region6: #{tpu_custom_call.1} parent=1 // pred_check
      _
    $region7: #{tpu_custom_call.1} parent=1 // pred_check_branch
      %23 = sbr.rel (0) target = $region9
    $region8: #{tpu_custom_call.1} parent=1 // pred_region
      _
    $region9: #{tpu_custom_call.1} parent=1 // pred_fallthru
      _
    // Predicated region
    $region10: #{tpu_custom_call.1} parent=1 // pred_check
      _
    $region11: #{tpu_custom_call.1} parent=1 // pred_check_branch
      %25 = sbr.rel (0) target = $region13
    $region12: #{tpu_custom_call.1} parent=1 // pred_region
      _
    $region13: #{tpu_custom_call.1} parent=1 // pred_fallthru
      _
    // Predicated region
    $region14: #{tpu_custom_call.1} parent=1 // pred_check
      _
    $region15: #{tpu_custom_call.1} parent=1 // pred_check_branch
      %27 = sbr.rel (0) target = $region17
    $region16: #{tpu_custom_call.1} parent=1 // pred_region
      %28 = dma.done [#allocation3], 512
    $region17: #{tpu_custom_call.1} parent=1 // pred_fallthru
      _
    %v29 = vld [vmem:[#allocation2] sm:$0xff]
    %v30 = vld [vmem:[#allocation2 + $0x8] sm:$0xff]
    %v31 = vld [vmem:[#allocation2 + $0x10] sm:$0xff]
    %v32 = vld [vmem:[#allocation2 + $0x18] sm:$0xff]
    %33 = vadd.xlane.f32.xlu0 %v29
    %v34 = vpop.xlane.xlu0 %33
    %35 = vadd.xlane.f32.xlu0 %v30
    %v36 = vpop.xlane.xlu0 %35
    %37 = vadd.xlane.f32.xlu0 %v31
    %v38 = vpop.xlane.xlu0 %37
    %39 = vadd.xlane.f32.xlu0 %v32
    %v40 = vpop.xlane.xlu0 %39
    %v41 = vrcp.pop 128.0
    %v42 = vmul.f32 %v34, %v41
    %v43 = vmul.f32 %v36, %v41
    %v44 = vmul.f32 %v38, %v41
    %v45 = vmul.f32 %v40, %v41
    %v46 = vsub.f32 %v29, %v42
    %v47 = vsub.f32 %v30, %v43
    %v48 = vsub.f32 %v31, %v44
    %v49 = vsub.f32 %v32, %v45
    %v50 = vmul.f32 %v46, %v46
    %v51 = vmul.f32 %v47, %v47
    %v52 = vmul.f32 %v48, %v48
    %v53 = vmul.f32 %v49, %v49
    %54 = vadd.xlane.f32.xlu0 %v50
    %v55 = vpop.xlane.xlu0 %54
    %56 = vadd.xlane.f32.xlu0 %v51
    %v57 = vpop.xlane.xlu0 %56
    %58 = vadd.xlane.f32.xlu0 %v52
    %v59 = vpop.xlane.xlu0 %58
    %60 = vadd.xlane.f32.xlu0 %v53
    %v61 = vpop.xlane.xlu0 %60
    %v62 = vmul.f32 %v55, %v41
    %v63 = vmul.f32 %v57, %v41
    %v64 = vmul.f32 %v59, %v41
    %v65 = vmul.f32 %v61, %v41
    %v66 = vadd.f32 %v62, 1e-12
    %v67 = vadd.f32 %v63, 1e-12
    %v68 = vadd.f32 %v64, 1e-12
    %v69 = vadd.f32 %v65, 1e-12
    %v70 = vrsqrt.pop %v66
    %v71 = vrsqrt.pop %v67
    %v72 = vrsqrt.pop %v68
    %v73 = vrsqrt.pop %v69
    %v74 = vmul.f32 %v46, %v70
    %v75 = vmul.f32 %v47, %v71
    %v76 = vmul.f32 %v48, %v72
    %v77 = vmul.f32 %v49, %v73
    %v78 = vld [vmem:[%s1] sm:$0x1]
    %v80 = vlaneseq
    %v81 = vshrl.u32 %v80, 7
    %v82 = vsub.s32 0, %v81
    %v83 = vrot.slane %v78, %v82
    %v85 = vmul.f32 %v74, %v83
    %v86 = vmul.f32 %v75, %v83
    %v87 = vmul.f32 %v76, %v83
    %v88 = vmul.f32 %v77, %v83
    %v89 = vld [vmem:[%s2] sm:$0x1]
    %v91 = vlaneseq
    %v92 = vshrl.u32 %v91, 7
    %v93 = vsub.s32 0, %v92
    %v94 = vrot.slane %v89, %v93
    %v96 = vadd.f32 %v85, %v94
    %v97 = vadd.f32 %v86, %v94
    %v98 = vadd.f32 %v87, %v94
    %v99 = vadd.f32 %v88, %v94
    %v100 = vpack.c.bf16 %v97, %v96
    %v101 = vpack.c.bf16 %v99, %v98
    %v104 = vunpack.c.l.b16 %v100
    %v105 = vunpack.c.h.b16 %v100
    %v106 = vunpack.c.l.b16 %v101
    %v107 = vunpack.c.h.b16 %v101
    %v108 = vpack.c.b16 %v104, %v104
    %v109 = vpack.c.b16 %v105, %v105
    %v110 = vpack.c.b16 %v106, %v106
    %v111 = vpack.c.b16 %v107, %v107
    %116 = vst [vmem:[#allocation5] sm:$0xf] %v108
    %117 = vst [vmem:[#allocation5 + $0x4] sm:$0xf] %v109
    %118 = vst [vmem:[#allocation5 + $0x8] sm:$0xf] %v110
    %119 = vst [vmem:[#allocation5 + $0xc] sm:$0xf] %v111
    // Predicated region
    $region18: #{tpu_custom_call.1} parent=1 // pred_check
      _
    $region19: #{tpu_custom_call.1} parent=1 // pred_check_branch
      %121 = sbr.rel (0) target = $region21
    $region20: #{tpu_custom_call.1} parent=1 // pred_region
      %s123 = ssub.s32 256, 256
      %124 = vsyncadd [#allocation4], %s123
      %s125 = sshll.u32 [#allocation5], 4
      %s126 = int_to_ptr.vmem [resolvable:$true] %s125
      %131 = dma.vmem_to_hbm [thread:$0]  %s126, 256, %s3, [#allocation4], 64, 64, 4
    $region21: #{tpu_custom_call.1} parent=1 // pred_fallthru
      _
    // Predicated region
    $region22: #{tpu_custom_call.1} parent=1 // pred_check
      _
    $region23: #{tpu_custom_call.1} parent=1 // pred_check_branch
      %133 = sbr.rel (0) target = $region25
    $region24: #{tpu_custom_call.1} parent=1 // pred_region
      %134 = dma.done [#allocation4], 256
    $region25: #{tpu_custom_call.1} parent=1 // pred_fallthru
      _
    %135 = vsyncpa [#allocation3], 1
    %136 = vsyncpa [#allocation4], 1

</llo_original>
